<compile_context>
chip_gen: v7x
topology: tpu7x:2x2x1
jax: 0.10.0
libtpu: 0.0.40
codegen_flags: <defaults>
</compile_context>

<pallas_src>
import jax
import jax.numpy as jnp
from jax.experimental import pallas as pl
from jax.experimental.pallas import tpu as pltpu

HIDDEN = 64
HIDDEN_PAD = 128                     # fc1 output padded to one full 128-lane vreg
IN_FEATURES = 28 * 28
VMEM_LIMIT_BYTES = 48 * 1024 * 1024  # <= v7x's 64 MiB physical VMEM; ample on v5e/v6e


def mlp_kernel(x_ref, w1_ref, b1_ref, w2_ref, b2_ref, o_ref):
    # x arrives f32 from HBM; cast to bf16 in-register (VPU has huge slack
    # under the x DMA) so the MXU runs bf16 with f32 accumulation.
    x = x_ref[...].astype(jnp.bfloat16)
    # fc1: (tile_b, 784)bf16 @ (784, 128)bf16 -> f32, + bias, ReLU.
    h = jnp.dot(x, w1_ref[...], preferred_element_type=jnp.float32)
    h = jnp.maximum(h + b1_ref[...], 0.0)
    # fc2 as VPU multiply + cross-lane (XLU) reduce; padded lanes of w2 are
    # zero so results match the 64-wide reference exactly.  At >= 1024-row
    # tiles with an f32 x stream this (and the sigmoid/EUP + store epilogue)
    # hides entirely under the per-step DMA on v5e/v6e/v7x.
    z = jnp.sum(h * w2_ref[...], axis=-1, keepdims=True) + b2_ref[...]
    o_ref[...] = jax.nn.sigmoid(z).astype(o_ref.dtype)


def prepare_params(w1, b1, w2, b2):
    """One-time weight prep (pad hidden 64->128, cast W1 to bf16).

    Hoisted out of the per-call wrapper so these small XLA ops and ~200 KB of
    HBM writes run once at init instead of on every forward pass.
    """
    w1_p = jnp.zeros((IN_FEATURES, HIDDEN_PAD), jnp.bfloat16)
    w1_p = w1_p.at[:, :HIDDEN].set(w1.astype(jnp.bfloat16))
    b1_p = jnp.zeros((1, HIDDEN_PAD), jnp.float32).at[:, :HIDDEN].set(
        b1.reshape(1, HIDDEN).astype(jnp.float32))
    w2_row = jnp.zeros((1, HIDDEN_PAD), jnp.float32).at[:, :HIDDEN].set(
        w2.reshape(1, HIDDEN).astype(jnp.float32))
    b2_2d = b2.reshape(1, 1).astype(jnp.float32)
    return w1_p, b1_p, w2_row, b2_2d


def _default_tile_b(B):
    # Small batches: one full-extent tile (legal for any B, even B < 8).
    # Larger batches: at least 2 tiles (v7x megacore sharding), 8-row aligned,
    # capped at 4096 rows (~12.9 MB of f32 x per step; x2 pipeline buffers plus
    # the resident weights and out buffers stay under the 48 MiB VMEM limit).
    if B <= 2048:
        return B
    return min(4096, max(1024, ((B // 2) // 8) * 8))


def simple_nn_forward(x, params, *, tile_b=None):
    """sigmoid(relu(x.view(-1, 784) @ W1 + b1) @ W2 + b2) -> (B, 1) float32."""
    w1_p, b1_p, w2_row, b2_2d = params
    B = x.shape[0]
    x2d = x.reshape(B, IN_FEATURES)           # == torch x.view(-1, 784)

    if tile_b is None:
        tile_b = _default_tile_b(B)
    tile_b = min(tile_b, B)
    num_tiles = pl.cdiv(B, tile_b)
    # No jnp.pad / slicing of x for non-dividing B: Pallas pads the last
    # partial input block (rows are discarded) and clips out-of-bounds rows of
    # the last output block, so the only HBM traffic is x itself.

    flops = 2 * B * IN_FEATURES * HIDDEN_PAD + 4 * B * HIDDEN_PAD
    bytes_accessed = (B * IN_FEATURES * 4              # x (f32) -- dominant stream
                      + B * 4                          # output
                      + IN_FEATURES * HIDDEN_PAD * 2   # W1 (bf16, resident)
                      + HIDDEN_PAD * 12)               # b1, w2 row, b2

    return pl.pallas_call(
        mlp_kernel,
        out_shape=jax.ShapeDtypeStruct((B, 1), jnp.float32),
        grid=(num_tiles,),
        in_specs=[
            pl.BlockSpec((tile_b, IN_FEATURES), lambda i: (i, 0)),      # x (f32, streamed)
            pl.BlockSpec((IN_FEATURES, HIDDEN_PAD), lambda i: (0, 0)),  # W1 (bf16, resident)
            pl.BlockSpec((1, HIDDEN_PAD), lambda i: (0, 0)),            # b1 (f32, resident)
            pl.BlockSpec((1, HIDDEN_PAD), lambda i: (0, 0)),            # W2 row (f32, resident)
            pl.BlockSpec((1, 1), lambda i: (0, 0)),                     # b2 (f32, resident)
        ],
        out_specs=pl.BlockSpec((tile_b, 1), lambda i: (i, 0)),
        compiler_params=pltpu.CompilerParams(
            dimension_semantics=("parallel",),
            vmem_limit_bytes=VMEM_LIMIT_BYTES),
        cost_estimate=pl.CostEstimate(
            flops=flops, transcendentals=2 * B, bytes_accessed=bytes_accessed),
    )(x2d, w1_p, b1_p, w2_row, b2_2d)


def init_params(key):
    """PyTorch-default-style uniform init; weights stored (in, out)."""
    k1, k2, k3, k4 = jax.random.split(key, 4)
    bound1 = 1.0 / jnp.sqrt(IN_FEATURES)
    bound2 = 1.0 / jnp.sqrt(HIDDEN)
    w1 = jax.random.uniform(k1, (IN_FEATURES, HIDDEN), jnp.float32, -bound1, bound1)
    b1 = jax.random.uniform(k2, (HIDDEN,), jnp.float32, -bound1, bound1)
    w2 = jax.random.uniform(k3, (HIDDEN, 1), jnp.float32, -bound2, bound2)
    b2 = jax.random.uniform(k4, (1,), jnp.float32, -bound2, bound2)
    return w1, b1, w2, b2


def _reference(x, w1, b1, w2, b2):
    x2d = x.reshape(x.shape[0], IN_FEATURES)
    return jax.nn.sigmoid(jnp.maximum(x2d @ w1 + b1, 0.0) @ w2 + b2)


if __name__ == "__main__":
    key = jax.random.PRNGKey(0)
    kx1, kx2, kp = jax.random.split(key, 3)

    w1, b1, w2, b2 = init_params(kp)
    params = prepare_params(w1, b1, w2, b2)   # hoisted: runs once, not per call
    fwd = jax.jit(simple_nn_forward, static_argnames=("tile_b",))

    # Case 1: tiny batch (single full-extent tile), MNIST-like NCHW input.
    x1 = jax.random.normal(kx1, (2, 1, 28, 28), jnp.float32)
    y1 = jax.block_until_ready(fwd(x1, params))
    assert y1.shape == (2, 1)
    assert jnp.allclose(y1, _reference(x1, w1, b1, w2, b2), atol=1e-2, rtol=1e-2)

    # Case 2: multi-tile batch with a non-dividing remainder (300 = 2*128 + 44),
    # exercising the partial last block (padded read / clipped write) path that
    # replaced the old jnp.pad copy.
    x2 = jax.random.normal(kx2, (300, 1, 28, 28), jnp.float32)
    y2 = jax.block_until_ready(fwd(x2, params, tile_b=128))
    assert y2.shape == (300, 1)
    assert jnp.allclose(y2, _reference(x2, w1, b1, w2, b2), atol=1e-2, rtol=1e-2)

    print("KERNEL_OK")
</pallas_src>

<mosaic_0001>
module attributes {stable_mosaic.version = 11 : i64} {
  func.func @mlp_kernel(%arg0: i32, %arg1: memref<2x784xf32, #tpu.memory_space<vmem>>, %arg2: memref<784x128xbf16, #tpu.memory_space<vmem>>, %arg3: memref<1x128xf32, #tpu.memory_space<vmem>>, %arg4: memref<1x128xf32, #tpu.memory_space<vmem>>, %arg5: memref<1x1xf32, #tpu.memory_space<vmem>>, %arg6: memref<2x1xf32, #tpu.memory_space<vmem>>) attributes {dimension_semantics = [#tpu.dimension_semantics<parallel>], iteration_bounds = array<i64: 1>, scalar_prefetch = 0 : i64, scratch_operands = 0 : i64, tpu.core_type = #tpu.core_type<tc>, window_params = [{transform_indices = @transform_0, window_bounds = array<i64: 2, 784>}, {pipeline_mode = #tpu.pipeline_mode<synchronous>, transform_indices = @transform_1, window_bounds = array<i64: 784, 128>}, {pipeline_mode = #tpu.pipeline_mode<synchronous>, transform_indices = @transform_2, window_bounds = array<i64: 1, 128>}, {pipeline_mode = #tpu.pipeline_mode<synchronous>, transform_indices = @transform_3, window_bounds = array<i64: 1, 128>}, {pipeline_mode = #tpu.pipeline_mode<synchronous>, transform_indices = @transform_4, window_bounds = array<i64: 1, 1>}, {transform_indices = @transform_5, window_bounds = array<i64: 2, 1>}]} {
    %c0 = arith.constant 0 : index
    %c0_0 = arith.constant 0 : index
    %0 = vector.load %arg1[%c0, %c0_0] : memref<2x784xf32, #tpu.memory_space<vmem>>, vector<2x784xf32>
    %1 = arith.truncf %0 : vector<2x784xf32> to vector<2x784xbf16>
    %c0_1 = arith.constant 0 : index
    %c0_2 = arith.constant 0 : index
    %2 = vector.load %arg2[%c0_1, %c0_2] : memref<784x128xbf16, #tpu.memory_space<vmem>>, vector<784x128xbf16>
    %cst = arith.constant dense<0.000000e+00> : vector<2x128xf32>
    %3 = tpu.matmul %1, %2, %cst {dimension_numbers = #tpu.dot_dimension_numbers<[1], [0], [0], [1], [0, 0, 1, 1], [], []>} : vector<2x784xbf16>, vector<784x128xbf16>, vector<2x128xf32> -> vector<2x128xf32>
    %c0_3 = arith.constant 0 : index
    %c0_4 = arith.constant 0 : index
    %4 = vector.load %arg3[%c0_3, %c0_4] : memref<1x128xf32, #tpu.memory_space<vmem>>, vector<1x128xf32>
    %5 = vector.broadcast %4 : vector<1x128xf32> to vector<2x128xf32>
    %6 = arith.addf %3, %5 : vector<2x128xf32>
    %cst_5 = arith.constant 0.000000e+00 : f32
    %7 = vector.broadcast %cst_5 : f32 to vector<2x128xf32>
    %8 = arith.maximumf %6, %7 : vector<2x128xf32>
    %c0_6 = arith.constant 0 : index
    %c0_7 = arith.constant 0 : index
    %9 = vector.load %arg4[%c0_6, %c0_7] : memref<1x128xf32, #tpu.memory_space<vmem>>, vector<1x128xf32>
    %10 = vector.broadcast %9 : vector<1x128xf32> to vector<2x128xf32>
    %11 = arith.mulf %8, %10 : vector<2x128xf32>
    %cst_8 = arith.constant dense<0.000000e+00> : vector<2xf32>
    %12 = vector.multi_reduction <add>, %11, %cst_8 [1] : vector<2x128xf32> to vector<2xf32>
    %13 = vector.shape_cast %12 : vector<2xf32> to vector<2x1xf32>
    %c0_9 = arith.constant 0 : index
    %c0_10 = arith.constant 0 : index
    %14 = vector.load %arg5[%c0_9, %c0_10] : memref<1x1xf32, #tpu.memory_space<vmem>>, vector<1x1xf32>
    %15 = vector.broadcast %14 : vector<1x1xf32> to vector<2x1xf32>
    %16 = arith.addf %13, %15 : vector<2x1xf32>
    %17 = arith.negf %16 : vector<2x1xf32>
    %18 = math.exp %17 : vector<2x1xf32>
    %cst_11 = arith.constant 1.000000e+00 : f32
    %19 = vector.broadcast %cst_11 : f32 to vector<2x1xf32>
    %20 = arith.addf %19, %18 : vector<2x1xf32>
    %21 = arith.divf %19, %20 : vector<2x1xf32>
    %c0_12 = arith.constant 0 : index
    %c0_13 = arith.constant 0 : index
    %22 = vector.load %arg6[%c0_12, %c0_13] : memref<2x1xf32, #tpu.memory_space<vmem>>, vector<2x1xf32>
    tpu.vector_store %arg6[%c0_12, %c0_13], %21 {strides = array<i32>} : memref<2x1xf32, #tpu.memory_space<vmem>>, vector<2x1xf32>,
    return
  }
  func.func @transform_0(%arg0: i32) -> (i32, i32) {
    %c0_i32 = arith.constant 0 : i32
    %c0_i32_0 = arith.constant 0 : i32
    return %arg0, %c0_i32 : i32, i32
  }
  func.func @transform_1(%arg0: i32) -> (i32, i32) {
    %c0_i32 = arith.constant 0 : i32
    %c0_i32_0 = arith.constant 0 : i32
    %c0_i32_1 = arith.constant 0 : i32
    return %c0_i32, %c0_i32_0 : i32, i32
  }
  func.func @transform_2(%arg0: i32) -> (i32, i32) {
    %c0_i32 = arith.constant 0 : i32
    %c0_i32_0 = arith.constant 0 : i32
    %c0_i32_1 = arith.constant 0 : i32
    return %c0_i32, %c0_i32_0 : i32, i32
  }
  func.func @transform_3(%arg0: i32) -> (i32, i32) {
    %c0_i32 = arith.constant 0 : i32
    %c0_i32_0 = arith.constant 0 : i32
    %c0_i32_1 = arith.constant 0 : i32
    return %c0_i32, %c0_i32_0 : i32, i32
  }
  func.func @transform_4(%arg0: i32) -> (i32, i32) {
    %c0_i32 = arith.constant 0 : i32
    %c0_i32_0 = arith.constant 0 : i32
    %c0_i32_1 = arith.constant 0 : i32
    return %c0_i32, %c0_i32_0 : i32, i32
  }
  func.func @transform_5(%arg0: i32) -> (i32, i32) {
    %c0_i32 = arith.constant 0 : i32
    %c0_i32_0 = arith.constant 0 : i32
    return %arg0, %c0_i32 : i32, i32
  }
}

</mosaic_0001>

<llo_original>
// kernel: simple_nn_forward.1
$region0: #{simple_nn_forward.1}
  #allocation0 [shape = 'u32[]', space=smem, size = 0x4, offset = 0x4, fixed_abs, tag = 'smem constant byte address 0x4 - core index']
  #allocation1 [shape = 'u32[144,128]{1,0:T(1,128)}', space=vmem, size = 0x12000, scoped, tag = 'internal scratch']
  #allocation2 [shape = 'f32[1,1]{1,0:T(1,128)S(1)}', space=vmem, size = 0x200, scoped, tag = 'scoped memory for simple_nn_forward.1']
  %s0 = inlined_call_operand.vmem [shape: f32[2,784], index: 0, kind: input, shape index: {}]
  %s1 = inlined_call_operand.hbm [shape: bf16[784,128], index: 1, kind: input, shape index: {}]
  %s2 = inlined_call_operand.vmem [shape: f32[1,128], index: 2, kind: input, shape index: {}]
  %s3 = inlined_call_operand.vmem [shape: f32[1,128], index: 3, kind: input, shape index: {}]
  %s4 = inlined_call_operand.<no memory space> [shape: f32[1,1], index: 4, kind: input, shape index: {}]
  %s5 = inlined_call_operand.vmem [shape: f32[2,1], index: 5, kind: output, shape index: {}]
  %s6 = sld [smem:[#allocation0]]
  $region34: #{simple_nn_forward.1} parent=0
    _
  %s8 = ssub.s32 1, %s6
  %s9 = scalar_select 0, %s8, %s6
  %v10 = vstv %s4
  %11 = vst [vmem:[#allocation2] sm:$0x1] %v10
  $region1: #{simple_nn_forward.1} parent=0
    #allocation3 [shape = 'u8[200704]{0}', space=vmem, size = 0x31000, scoped, tag = 'input window, operand 1, single buffered']
    #allocation4 [shape = 's32[1]{0}', space=sflag, size = 0x4, scoped, tag = 'scoped memory for simple_nn_forward.1']
    %12 = vsyncpa [#allocation4], 0
    // Predicated region
    $region2: #{simple_nn_forward.1} parent=1 // pred_check
      _
    $region3: #{simple_nn_forward.1} parent=1 // pred_check_branch
      %14 = sbr.rel (0) target = $region5
    $region4: #{simple_nn_forward.1} parent=1 // pred_region
      _
    $region5: #{simple_nn_forward.1} parent=1 // pred_fallthru
      _
    // Predicated region
    $region6: #{simple_nn_forward.1} parent=1 // pred_check
      _
    $region7: #{simple_nn_forward.1} parent=1 // pred_check_branch
      %16 = sbr.rel (0) target = $region9
    $region8: #{simple_nn_forward.1} parent=1 // pred_region
      %s18 = ssub.s32 6272, 6272
      %19 = vsyncadd [#allocation4], %s18
      %s20 = sshll.u32 [#allocation3], 4
      %s21 = int_to_ptr.vmem [resolvable:$true] %s20
      %26 = dma.hbm_to_vmem [thread:$0]  %s1, 6272, %s21, [#allocation4], 64, 64, 4
    $region9: #{simple_nn_forward.1} parent=1 // pred_fallthru
      _
    // Predicated region
    $region10: #{simple_nn_forward.1} parent=1 // pred_check
      _
    $region11: #{simple_nn_forward.1} parent=1 // pred_check_branch
      %28 = sbr.rel (0) target = $region13
    $region12: #{simple_nn_forward.1} parent=1 // pred_region
      _
    $region13: #{simple_nn_forward.1} parent=1 // pred_fallthru
      _
    // Predicated region
    $region14: #{simple_nn_forward.1} parent=1 // pred_check
      _
    $region15: #{simple_nn_forward.1} parent=1 // pred_check_branch
      %30 = sbr.rel (0) target = $region17
    $region16: #{simple_nn_forward.1} parent=1 // pred_region
      _
    $region17: #{simple_nn_forward.1} parent=1 // pred_fallthru
      _
    // Predicated region
    $region18: #{simple_nn_forward.1} parent=1 // pred_check
      _
    $region19: #{simple_nn_forward.1} parent=1 // pred_check_branch
      %32 = sbr.rel (0) target = $region21
    $region20: #{simple_nn_forward.1} parent=1 // pred_region
      _
    $region21: #{simple_nn_forward.1} parent=1 // pred_fallthru
      _
    // Predicated region
    $region22: #{simple_nn_forward.1} parent=1 // pred_check
      _
    $region23: #{simple_nn_forward.1} parent=1 // pred_check_branch
      %34 = sbr.rel (0) target = $region25
    $region24: #{simple_nn_forward.1} parent=1 // pred_region
      %35 = dma.done [#allocation4], 6272
    $region25: #{simple_nn_forward.1} parent=1 // pred_fallthru
      _
    %v37 = vld [vmem:[%s0] sm:$0xff]
    %v38 = vld [vmem:[%s0 + $0x8] sm:$0x3f]
    %v41 = vcombine.high %v37, %v37
    %v43 = vunpack.c.l.s4 1983009808
    %v44 = vunpack.c.0.s8 %v43
    %v45 = vlaneseq
    %v46 = vshrl.u32 %v45, 7
    %v47 = vsub.s32 %v44, %v46
    %v48 = vrot.slane %v37, %v47
    %v50 = vunpack.c.l.s4 1983009808
    %v51 = vunpack.c.0.s8 %v50
    %v52 = vlaneseq
    %v53 = vshrl.u32 %v52, 7
    %v54 = vsub.s32 %v51, %v53
    %v55 = vrot.slane %v41, %v54
    %v56 = vcombine.high %v48, %v48
    %v57 = vcombine.high %v55, %v55
    %v58 = vcombine.high %v38, %v38
    %v60 = vunpack.c.l.s4 1983009808
    %v61 = vunpack.c.0.s8 %v60
    %v62 = vlaneseq
    %v63 = vshrl.u32 %v62, 7
    %v64 = vsub.s32 %v61, %v63
    %v65 = vrot.slane %v38, %v64
    %v67 = vunpack.c.l.s4 1983009808
    %v68 = vunpack.c.0.s8 %v67
    %v69 = vlaneseq
    %v70 = vshrl.u32 %v69, 7
    %v71 = vsub.s32 %v68, %v70
    %v72 = vrot.slane %v58, %v71
    %v73 = vcombine.high %v65, %v65
    %v81 = vpack.c.bf16 %v48, %v48
    %v82 = vpack.c.bf16 %v56, %v56
    %v83 = vpack.c.bf16 %v55, %v55
    %v84 = vpack.c.bf16 %v57, %v57
    %v85 = vpack.c.bf16 %v65, %v65
    %v86 = vpack.c.bf16 %v73, %v73
    %v87 = vpack.c.bf16 %v72, %v72
    %v88 = vld [vmem:[#allocation3] sm:$0xf]
    %v89 = vld [vmem:[#allocation3 + $0x4] sm:$0xf]
    %v90 = vld [vmem:[#allocation3 + $0x8] sm:$0xf]
    %v91 = vld [vmem:[#allocation3 + $0xc] sm:$0xf]
    %v92 = vld [vmem:[#allocation3 + $0x10] sm:$0xf]
    %v93 = vld [vmem:[#allocation3 + $0x14] sm:$0xf]
    %v94 = vld [vmem:[#allocation3 + $0x18] sm:$0xf]
    %v95 = vld [vmem:[#allocation3 + $0x1c] sm:$0xf]
    %v96 = vld [vmem:[#allocation3 + $0x20] sm:$0xf]
    %v97 = vld [vmem:[#allocation3 + $0x24] sm:$0xf]
    %v98 = vld [vmem:[#allocation3 + $0x28] sm:$0xf]
    %v99 = vld [vmem:[#allocation3 + $0x2c] sm:$0xf]
    %v100 = vld [vmem:[#allocation3 + $0x30] sm:$0xf]
    %v101 = vld [vmem:[#allocation3 + $0x34] sm:$0xf]
    %v102 = vld [vmem:[#allocation3 + $0x38] sm:$0xf]
    %v103 = vld [vmem:[#allocation3 + $0x3c] sm:$0xf]
    %v104 = vld [vmem:[#allocation3 + $0x40] sm:$0xf]
    %v105 = vld [vmem:[#allocation3 + $0x44] sm:$0xf]
    %v106 = vld [vmem:[#allocation3 + $0x48] sm:$0xf]
    %v107 = vld [vmem:[#allocation3 + $0x4c] sm:$0xf]
    %v108 = vld [vmem:[#allocation3 + $0x50] sm:$0xf]
    %v109 = vld [vmem:[#allocation3 + $0x54] sm:$0xf]
    %v110 = vld [vmem:[#allocation3 + $0x58] sm:$0xf]
    %v111 = vld [vmem:[#allocation3 + $0x5c] sm:$0xf]
    %v112 = vld [vmem:[#allocation3 + $0x60] sm:$0xf]
    %v113 = vld [vmem:[#allocation3 + $0x64] sm:$0xf]
    %v114 = vld [vmem:[#allocation3 + $0x68] sm:$0xf]
    %v115 = vld [vmem:[#allocation3 + $0x6c] sm:$0xf]
    %v116 = vld [vmem:[#allocation3 + $0x70] sm:$0xf]
    %v117 = vld [vmem:[#allocation3 + $0x74] sm:$0xf]
    %v118 = vld [vmem:[#allocation3 + $0x78] sm:$0xf]
    %v119 = vld [vmem:[#allocation3 + $0x7c] sm:$0xf]
    %v120 = vld [vmem:[#allocation3 + $0x80] sm:$0xf]
    %v121 = vld [vmem:[#allocation3 + $0x84] sm:$0xf]
    %v122 = vld [vmem:[#allocation3 + $0x88] sm:$0xf]
    %v123 = vld [vmem:[#allocation3 + $0x8c] sm:$0xf]
    %v124 = vld [vmem:[#allocation3 + $0x90] sm:$0xf]
    %v125 = vld [vmem:[#allocation3 + $0x94] sm:$0xf]
    %v126 = vld [vmem:[#allocation3 + $0x98] sm:$0xf]
    %v127 = vld [vmem:[#allocation3 + $0x9c] sm:$0xf]
    %v128 = vld [vmem:[#allocation3 + $0xa0] sm:$0xf]
    %v129 = vld [vmem:[#allocation3 + $0xa4] sm:$0xf]
    %v130 = vld [vmem:[#allocation3 + $0xa8] sm:$0xf]
    %v131 = vld [vmem:[#allocation3 + $0xac] sm:$0xf]
    %v132 = vld [vmem:[#allocation3 + $0xb0] sm:$0xf]
    %v133 = vld [vmem:[#allocation3 + $0xb4] sm:$0xf]
    %v134 = vld [vmem:[#allocation3 + $0xb8] sm:$0xf]
    %v135 = vld [vmem:[#allocation3 + $0xbc] sm:$0xf]
    %v136 = vld [vmem:[#allocation3 + $0xc0] sm:$0xf]
    %v137 = vld [vmem:[#allocation3 + $0xc4] sm:$0xf]
    %v138 = vld [vmem:[#allocation3 + $0xc8] sm:$0xf]
    %v139 = vld [vmem:[#allocation3 + $0xcc] sm:$0xf]
    %v140 = vld [vmem:[#allocation3 + $0xd0] sm:$0xf]
    %v141 = vld [vmem:[#allocation3 + $0xd4] sm:$0xf]
    %v142 = vld [vmem:[#allocation3 + $0xd8] sm:$0xf]
    %v143 = vld [vmem:[#allocation3 + $0xdc] sm:$0xf]
    %v144 = vld [vmem:[#allocation3 + $0xe0] sm:$0xf]
    %v145 = vld [vmem:[#allocation3 + $0xe4] sm:$0xf]
    %v146 = vld [vmem:[#allocation3 + $0xe8] sm:$0xf]
    %v147 = vld [vmem:[#allocation3 + $0xec] sm:$0xf]
    %v148 = vld [vmem:[#allocation3 + $0xf0] sm:$0xf]
    %v149 = vld [vmem:[#allocation3 + $0xf4] sm:$0xf]
    %v150 = vld [vmem:[#allocation3 + $0xf8] sm:$0xf]
    %v151 = vld [vmem:[#allocation3 + $0xfc] sm:$0xf]
    %v152 = vld [vmem:[#allocation3 + $0x100] sm:$0xf]
    %v153 = vld [vmem:[#allocation3 + $0x104] sm:$0xf]
    %v154 = vld [vmem:[#allocation3 + $0x108] sm:$0xf]
    %v155 = vld [vmem:[#allocation3 + $0x10c] sm:$0xf]
    %v156 = vld [vmem:[#allocation3 + $0x110] sm:$0xf]
    %v157 = vld [vmem:[#allocation3 + $0x114] sm:$0xf]
    %v158 = vld [vmem:[#allocation3 + $0x118] sm:$0xf]
    %v159 = vld [vmem:[#allocation3 + $0x11c] sm:$0xf]
    %v160 = vld [vmem:[#allocation3 + $0x120] sm:$0xf]
    %v161 = vld [vmem:[#allocation3 + $0x124] sm:$0xf]
    %v162 = vld [vmem:[#allocation3 + $0x128] sm:$0xf]
    %v163 = vld [vmem:[#allocation3 + $0x12c] sm:$0xf]
    %v164 = vld [vmem:[#allocation3 + $0x130] sm:$0xf]
    %v165 = vld [vmem:[#allocation3 + $0x134] sm:$0xf]
    %v166 = vld [vmem:[#allocation3 + $0x138] sm:$0xf]
    %v167 = vld [vmem:[#allocation3 + $0x13c] sm:$0xf]
    %v168 = vld [vmem:[#allocation3 + $0x140] sm:$0xf]
    %v169 = vld [vmem:[#allocation3 + $0x144] sm:$0xf]
    %v170 = vld [vmem:[#allocation3 + $0x148] sm:$0xf]
    %v171 = vld [vmem:[#allocation3 + $0x14c] sm:$0xf]
    %v172 = vld [vmem:[#allocation3 + $0x150] sm:$0xf]
    %v173 = vld [vmem:[#allocation3 + $0x154] sm:$0xf]
    %v174 = vld [vmem:[#allocation3 + $0x158] sm:$0xf]
    %v175 = vld [vmem:[#allocation3 + $0x15c] sm:$0xf]
    %v176 = vld [vmem:[#allocation3 + $0x160] sm:$0xf]
    %v177 = vld [vmem:[#allocation3 + $0x164] sm:$0xf]
    %v178 = vld [vmem:[#allocation3 + $0x168] sm:$0xf]
    %v179 = vld [vmem:[#allocation3 + $0x16c] sm:$0xf]
    %v180 = vld [vmem:[#allocation3 + $0x170] sm:$0xf]
    %v181 = vld [vmem:[#allocation3 + $0x174] sm:$0xf]
    %v182 = vld [vmem:[#allocation3 + $0x178] sm:$0xf]
    %v183 = vld [vmem:[#allocation3 + $0x17c] sm:$0xf]
    %v184 = vld [vmem:[#allocation3 + $0x180] sm:$0xf]
    %v185 = vld [vmem:[#allocation3 + $0x184] sm:$0xf]
    %v186 = vld [vmem:[%s2] sm:$0x1]
    %v188 = vlaneseq
    %v189 = vshrl.u32 %v188, 7
    %v190 = vsub.s32 0, %v189
    %v191 = vrot.slane %v186, %v190
    %v291 = vunpack.c.l.b16 %v88
    %v292 = vunpack.c.l.b16 %v89
    %v293 = vunpack.c.l.b16 %v90
    %v294 = vunpack.c.l.b16 %v91
    %v295 = vunpack.c.l.b16 %v92
    %v296 = vunpack.c.l.b16 %v93
    %v297 = vunpack.c.l.b16 %v94
    %v298 = vunpack.c.l.b16 %v95
    %v299 = vunpack.c.l.b16 %v96
    %v300 = vunpack.c.l.b16 %v97
    %v301 = vunpack.c.l.b16 %v98
    %v302 = vunpack.c.l.b16 %v99
    %v303 = vunpack.c.l.b16 %v100
    %v304 = vunpack.c.l.b16 %v101
    %v305 = vunpack.c.l.b16 %v102
    %v306 = vunpack.c.l.b16 %v103
    %v307 = vunpack.c.l.b16 %v104
    %v308 = vunpack.c.l.b16 %v105
    %v309 = vunpack.c.l.b16 %v106
    %v310 = vunpack.c.l.b16 %v107
    %v311 = vunpack.c.l.b16 %v108
    %v312 = vunpack.c.l.b16 %v109
    %v313 = vunpack.c.l.b16 %v110
    %v314 = vunpack.c.l.b16 %v111
    %v315 = vunpack.c.l.b16 %v112
    %v316 = vunpack.c.l.b16 %v113
    %v317 = vunpack.c.l.b16 %v114
    %v318 = vunpack.c.l.b16 %v115
    %v319 = vunpack.c.l.b16 %v116
    %v320 = vunpack.c.l.b16 %v117
    %v321 = vunpack.c.l.b16 %v118
    %v322 = vunpack.c.l.b16 %v119
    %v323 = vunpack.c.l.b16 %v120
    %v324 = vunpack.c.l.b16 %v121
    %v325 = vunpack.c.l.b16 %v122
    %v326 = vunpack.c.l.b16 %v123
    %v327 = vunpack.c.l.b16 %v124
    %v328 = vunpack.c.l.b16 %v125
    %v329 = vunpack.c.l.b16 %v126
    %v330 = vunpack.c.l.b16 %v127
    %v331 = vunpack.c.l.b16 %v128
    %v332 = vunpack.c.l.b16 %v129
    %v333 = vunpack.c.l.b16 %v130
    %v334 = vunpack.c.l.b16 %v131
    %v335 = vunpack.c.l.b16 %v132
    %v336 = vunpack.c.l.b16 %v133
    %v337 = vunpack.c.l.b16 %v134
    %v338 = vunpack.c.l.b16 %v135
    %v339 = vunpack.c.l.b16 %v136
    %v340 = vunpack.c.l.b16 %v137
    %v341 = vunpack.c.l.b16 %v138
    %v342 = vunpack.c.l.b16 %v139
    %v343 = vunpack.c.l.b16 %v140
    %v344 = vunpack.c.l.b16 %v141
    %v345 = vunpack.c.l.b16 %v142
    %v346 = vunpack.c.l.b16 %v143
    %v347 = vunpack.c.l.b16 %v144
    %v348 = vunpack.c.l.b16 %v145
    %v349 = vunpack.c.l.b16 %v146
    %v350 = vunpack.c.l.b16 %v147
    %v351 = vunpack.c.l.b16 %v148
    %v352 = vunpack.c.l.b16 %v149
    %v353 = vunpack.c.l.b16 %v150
    %v354 = vunpack.c.l.b16 %v151
    %v355 = vunpack.c.l.b16 %v152
    %v356 = vunpack.c.l.b16 %v153
    %v357 = vunpack.c.l.b16 %v154
    %v358 = vunpack.c.l.b16 %v155
    %v359 = vunpack.c.l.b16 %v156
    %v360 = vunpack.c.l.b16 %v157
    %v361 = vunpack.c.l.b16 %v158
    %v362 = vunpack.c.l.b16 %v159
    %v363 = vunpack.c.l.b16 %v160
    %v364 = vunpack.c.l.b16 %v161
    %v365 = vunpack.c.l.b16 %v162
    %v366 = vunpack.c.l.b16 %v163
    %v367 = vunpack.c.l.b16 %v164
    %v368 = vunpack.c.l.b16 %v165
    %v369 = vunpack.c.l.b16 %v166
    %v370 = vunpack.c.l.b16 %v167
    %v371 = vunpack.c.l.b16 %v168
    %v372 = vunpack.c.l.b16 %v169
    %v373 = vunpack.c.l.b16 %v170
    %v374 = vunpack.c.l.b16 %v171
    %v375 = vunpack.c.l.b16 %v172
    %v376 = vunpack.c.l.b16 %v173
    %v377 = vunpack.c.l.b16 %v174
    %v378 = vunpack.c.l.b16 %v175
    %v379 = vunpack.c.l.b16 %v176
    %v380 = vunpack.c.l.b16 %v177
    %v381 = vunpack.c.l.b16 %v178
    %v382 = vunpack.c.l.b16 %v179
    %v383 = vunpack.c.l.b16 %v180
    %v384 = vunpack.c.l.b16 %v181
    %v385 = vunpack.c.l.b16 %v182
    %v386 = vunpack.c.l.b16 %v183
    %v387 = vunpack.c.l.b16 %v184
    %v388 = vunpack.c.l.b16 %v185
    %v389 = vpack.c.b16 %v292, %v291
    %v390 = vpack.c.b16 %v294, %v293
    %v391 = vpack.c.b16 %v296, %v295
    %v392 = vpack.c.b16 %v298, %v297
    %v393 = vpack.c.b16 %v300, %v299
    %v394 = vpack.c.b16 %v302, %v301
    %v395 = vpack.c.b16 %v304, %v303
    %v396 = vpack.c.b16 %v306, %v305
    %v397 = vpack.c.b16 %v308, %v307
    %v398 = vpack.c.b16 %v310, %v309
    %v399 = vpack.c.b16 %v312, %v311
    %v400 = vpack.c.b16 %v314, %v313
    %v401 = vpack.c.b16 %v316, %v315
    %v402 = vpack.c.b16 %v318, %v317
    %v403 = vpack.c.b16 %v320, %v319
    %v404 = vpack.c.b16 %v322, %v321
    %v405 = vpack.c.b16 %v324, %v323
    %v406 = vpack.c.b16 %v326, %v325
    %v407 = vpack.c.b16 %v328, %v327
    %v408 = vpack.c.b16 %v330, %v329
    %v409 = vpack.c.b16 %v332, %v331
    %v410 = vpack.c.b16 %v334, %v333
    %v411 = vpack.c.b16 %v336, %v335
    %v412 = vpack.c.b16 %v338, %v337
    %v413 = vpack.c.b16 %v340, %v339
    %v414 = vpack.c.b16 %v342, %v341
    %v415 = vpack.c.b16 %v344, %v343
    %v416 = vpack.c.b16 %v346, %v345
    %v417 = vpack.c.b16 %v348, %v347
    %v418 = vpack.c.b16 %v350, %v349
    %v419 = vpack.c.b16 %v352, %v351
    %v420 = vpack.c.b16 %v354, %v353
    %v421 = vpack.c.b16 %v356, %v355
    %v422 = vpack.c.b16 %v358, %v357
    %v423 = vpack.c.b16 %v360, %v359
    %v424 = vpack.c.b16 %v362, %v361
    %v425 = vpack.c.b16 %v364, %v363
    %v426 = vpack.c.b16 %v366, %v365
    %v427 = vpack.c.b16 %v368, %v367
    %v428 = vpack.c.b16 %v370, %v369
    %v429 = vpack.c.b16 %v372, %v371
    %v430 = vpack.c.b16 %v374, %v373
    %v431 = vpack.c.b16 %v376, %v375
    %v432 = vpack.c.b16 %v378, %v377
    %v433 = vpack.c.b16 %v380, %v379
    %v434 = vpack.c.b16 %v382, %v381
    %v435 = vpack.c.b16 %v384, %v383
    %v436 = vpack.c.b16 %v386, %v385
    %v437 = vpack.c.b16 %v388, %v387
    %vm487 = vcmask 130048
    %v489 = vsel %vm487, %v87, 0
    %491 = vmatprep.subr.bf16.mxu0 0
    %492 = vmatpush1.bf16.msra.mxu0 %v389
    %493 = vmatprep.subr.bf16.mxu0 0
    %494 = vmatpush1.bf16.msra.mxu0 %v390
    %495 = vmatprep.subr.bf16.mxu0 0
    %496 = vmatpush1.bf16.msra.mxu0 %v391
    %497 = vmatprep.subr.bf16.mxu0 0
    %498 = vmatpush1.bf16.msra.mxu0 %v392
    %499 = vmatprep.subr.bf16.mxu0 0
    %500 = vmatpush1.bf16.msra.mxu0 %v393
    %501 = vmatprep.subr.bf16.mxu0 0
    %502 = vmatpush1.bf16.msra.mxu0 %v394
    %503 = vmatprep.subr.bf16.mxu0 0
    %504 = vmatpush1.bf16.msra.mxu0 %v395
    %505 = vmatprep.subr.bf16.mxu0 0
    %506 = vmatpush1.bf16.msra.mxu0 %v396
    %507 = vmatprep.subr.bf16.mxu0 0
    %508 = vmatpush1.bf16.msra.mxu0 %v397
    %509 = vmatprep.subr.bf16.mxu0 0
    %510 = vmatpush1.bf16.msra.mxu0 %v398
    %511 = vmatprep.subr.bf16.mxu0 0
    %512 = vmatpush1.bf16.msra.mxu0 %v399
    %513 = vmatprep.subr.bf16.mxu0 0
    %514 = vmatpush1.bf16.msra.mxu0 %v400
    %515 = vmatprep.subr.bf16.mxu0 0
    %516 = vmatpush1.bf16.msra.mxu0 %v401
    %517 = vmatprep.subr.bf16.mxu0 0
    %518 = vmatpush1.bf16.msra.mxu0 %v402
    %519 = vmatprep.subr.bf16.mxu0 0
    %520 = vmatpush1.bf16.msra.mxu0 %v403
    %521 = vmatprep.subr.bf16.mxu0 0
    %522 = vmatpush1.bf16.msra.mxu0 %v404
    %523 = vmatprep.mubr.bf16.mxu0 %v82
    %524 = vmatmul.mubr.bf16.gmra.mrb[0].mxu0 %v81
    %v525 = vpop.f32.mrb[0].mxu0
    %v526 = vadd.f32 %v191, %v525
    %v527 = vpop.f32.mrb[0].mxu0
    %v528 = vpop.f32.mrb[0].mxu0
    %v529 = vpop.f32.mrb[0].mxu0
    %530 = vdwg.mxu0
    %531 = vmatprep.subr.bf16.mxu0 0
    %532 = vmatpush1.bf16.msra.mxu0 %v405
    %533 = vmatprep.subr.bf16.mxu0 0
    %534 = vmatpush1.bf16.msra.mxu0 %v406
    %535 = vmatprep.subr.bf16.mxu0 0
    %536 = vmatpush1.bf16.msra.mxu0 %v407
    %537 = vmatprep.subr.bf16.mxu0 0
    %538 = vmatpush1.bf16.msra.mxu0 %v408
    %539 = vmatprep.subr.bf16.mxu0 0
    %540 = vmatpush1.bf16.msra.mxu0 %v409
    %541 = vmatprep.subr.bf16.mxu0 0
    %542 = vmatpush1.bf16.msra.mxu0 %v410
    %543 = vmatprep.subr.bf16.mxu0 0
    %544 = vmatpush1.bf16.msra.mxu0 %v411
    %545 = vmatprep.subr.bf16.mxu0 0
    %546 = vmatpush1.bf16.msra.mxu0 %v412
    %547 = vmatprep.subr.bf16.mxu0 0
    %548 = vmatpush1.bf16.msra.mxu0 %v413
    %549 = vmatprep.subr.bf16.mxu0 0
    %550 = vmatpush1.bf16.msra.mxu0 %v414
    %551 = vmatprep.subr.bf16.mxu0 0
    %552 = vmatpush1.bf16.msra.mxu0 %v415
    %553 = vmatprep.subr.bf16.mxu0 0
    %554 = vmatpush1.bf16.msra.mxu0 %v416
    %555 = vmatprep.subr.bf16.mxu0 0
    %556 = vmatpush1.bf16.msra.mxu0 %v417
    %557 = vmatprep.subr.bf16.mxu0 0
    %558 = vmatpush1.bf16.msra.mxu0 %v418
    %559 = vmatprep.subr.bf16.mxu0 0
    %560 = vmatpush1.bf16.msra.mxu0 %v419
    %561 = vmatprep.subr.bf16.mxu0 0
    %562 = vmatpush1.bf16.msra.mxu0 %v420
    %563 = vmatprep.mubr.bf16.mxu0 %v84
    %564 = vmatmul.mubr.bf16.gmra.mrb[0].mxu0 %v83
    %v565 = vpop.f32.mrb[0].mxu0
    %v566 = vadd.f32 %v526, %v565
    %v567 = vpop.f32.mrb[0].mxu0
    %v568 = vpop.f32.mrb[0].mxu0
    %v569 = vpop.f32.mrb[0].mxu0
    %570 = vdwg.mxu0
    %571 = vmatprep.subr.bf16.mxu0 0
    %572 = vmatpush1.bf16.msra.mxu0 %v421
    %573 = vmatprep.subr.bf16.mxu0 0
    %574 = vmatpush1.bf16.msra.mxu0 %v422
    %575 = vmatprep.subr.bf16.mxu0 0
    %576 = vmatpush1.bf16.msra.mxu0 %v423
    %577 = vmatprep.subr.bf16.mxu0 0
    %578 = vmatpush1.bf16.msra.mxu0 %v424
    %579 = vmatprep.subr.bf16.mxu0 0
    %580 = vmatpush1.bf16.msra.mxu0 %v425
    %581 = vmatprep.subr.bf16.mxu0 0
    %582 = vmatpush1.bf16.msra.mxu0 %v426
    %583 = vmatprep.subr.bf16.mxu0 0
    %584 = vmatpush1.bf16.msra.mxu0 %v427
    %585 = vmatprep.subr.bf16.mxu0 0
    %586 = vmatpush1.bf16.msra.mxu0 %v428
    %587 = vmatprep.subr.bf16.mxu0 0
    %588 = vmatpush1.bf16.msra.mxu0 %v429
    %589 = vmatprep.subr.bf16.mxu0 0
    %590 = vmatpush1.bf16.msra.mxu0 %v430
    %591 = vmatprep.subr.bf16.mxu0 0
    %592 = vmatpush1.bf16.msra.mxu0 %v431
    %593 = vmatprep.subr.bf16.mxu0 0
    %594 = vmatpush1.bf16.msra.mxu0 %v432
    %595 = vmatprep.subr.bf16.mxu0 0
    %596 = vmatpush1.bf16.msra.mxu0 %v433
    %597 = vmatprep.subr.bf16.mxu0 0
    %598 = vmatpush1.bf16.msra.mxu0 %v434
    %599 = vmatprep.subr.bf16.mxu0 0
    %600 = vmatpush1.bf16.msra.mxu0 %v435
    %601 = vmatprep.subr.bf16.mxu0 0
    %602 = vmatpush1.bf16.msra.mxu0 %v436
    %603 = vmatprep.mubr.bf16.mxu0 %v86
    %604 = vmatmul.mubr.bf16.gmra.mrb[0].mxu0 %v85
    %v605 = vpop.f32.mrb[0].mxu0
    %v606 = vadd.f32 %v566, %v605
    %v607 = vpop.f32.mrb[0].mxu0
    %v608 = vpop.f32.mrb[0].mxu0
    %v609 = vpop.f32.mrb[0].mxu0
    %610 = vdwg.mxu0
    %611 = vmatprep.subr.bf16.mxu0 0
    %612 = vmatpush1.bf16.msra.mxu0 %v437
    %613 = vmatprep.subr.bf16.mxu0 0
    %614 = vmatpush1.bf16.msra.mxu0 0
    %615 = vmatprep.subr.bf16.mxu0 0
    %616 = vmatpush1.bf16.msra.mxu0 0
    %617 = vmatprep.subr.bf16.mxu0 0
    %618 = vmatpush1.bf16.msra.mxu0 0
    %619 = vmatprep.subr.bf16.mxu0 0
    %620 = vmatpush1.bf16.msra.mxu0 0
    %621 = vmatprep.subr.bf16.mxu0 0
    %622 = vmatpush1.bf16.msra.mxu0 0
    %623 = vmatprep.subr.bf16.mxu0 0
    %624 = vmatpush1.bf16.msra.mxu0 0
    %625 = vmatprep.subr.bf16.mxu0 0
    %626 = vmatpush1.bf16.msra.mxu0 0
    %627 = vmatprep.subr.bf16.mxu0 0
    %628 = vmatpush1.bf16.msra.mxu0 0
    %629 = vmatprep.subr.bf16.mxu0 0
    %630 = vmatpush1.bf16.msra.mxu0 0
    %631 = vmatprep.subr.bf16.mxu0 0
    %632 = vmatpush1.bf16.msra.mxu0 0
    %633 = vmatprep.subr.bf16.mxu0 0
    %634 = vmatpush1.bf16.msra.mxu0 0
    %635 = vmatprep.subr.bf16.mxu0 0
    %636 = vmatpush1.bf16.msra.mxu0 0
    %637 = vmatprep.subr.bf16.mxu0 0
    %638 = vmatpush1.bf16.msra.mxu0 0
    %639 = vmatprep.subr.bf16.mxu0 0
    %640 = vmatpush1.bf16.msra.mxu0 0
    %641 = vmatprep.subr.bf16.mxu0 0
    %642 = vmatpush1.bf16.msra.mxu0 0
    %643 = vmatprep.mubr.bf16.mxu0 0
    %644 = vmatmul.mubr.bf16.gmra.mrb[0].mxu0 %v489
    %v645 = vpop.f32.mrb[0].mxu0
    %v646 = vadd.f32 %v606, %v645
    %v647 = vpop.f32.mrb[0].mxu0
    %v648 = vpop.f32.mrb[0].mxu0
    %v649 = vpop.f32.mrb[0].mxu0
    %650 = vdwg.mxu0
    %v651 = vmax.f32 %v646, 0.0
    %v652 = vld [vmem:[%s3] sm:$0x1]
    %v654 = vlaneseq
    %v655 = vshrl.u32 %v654, 7
    %v656 = vsub.s32 0, %v655
    %v657 = vrot.slane %v652, %v656
    %v659 = vmul.f32 %v651, %v657
    %vm660 = vcmask 1041408
    %v661 = vsel %vm660, %v659, 0.0
    %662 = vadd.xlane.f32.xlu0 %v661
    %v663 = vpop.xlane.xlu0 %662
    %v664 = vld [vmem:[#allocation2] sm:$0x1]
    %v666 = vlaneseq
    %v667 = vshrl.u32 %v666, 7
    %v668 = vsub.s32 0, %v667
    %v669 = vrot.slane %v664, %v668
    %v671 = vadd.f32 %v663, %v669
    %v672 = vxor.u32 %v671, 2147483648
    %v673 = vmul.f32 %v672, 1.442695
    %v674 = vpow.pop %v673
    %v675 = vadd.f32 %v674, 1.0
    %v676 = vrcp.pop %v675
    %v677 = vmul.f32 1.0, %v676
    %vm678 = vcmask 1024
    %679 = vst.msk [vmem:[%s5] sm:$0x3] %vm678, %v677
    // Predicated region
    $region26: #{simple_nn_forward.1} parent=1 // pred_check
      _
    $region27: #{simple_nn_forward.1} parent=1 // pred_check_branch
      %681 = sbr.rel (0) target = $region29
    $region28: #{simple_nn_forward.1} parent=1 // pred_region
      _
    $region29: #{simple_nn_forward.1} parent=1 // pred_fallthru
      _
    // Predicated region
    $region30: #{simple_nn_forward.1} parent=1 // pred_check
      _
    $region31: #{simple_nn_forward.1} parent=1 // pred_check_branch
      %683 = sbr.rel (0) target = $region33
    $region32: #{simple_nn_forward.1} parent=1 // pred_region
      _
    $region33: #{simple_nn_forward.1} parent=1 // pred_fallthru
      _
    %684 = vsyncpa [#allocation4], 1

</llo_original>
